<compile_context>
chip_gen: v5e
topology: v5e:2x2
jax: 0.10.0
libtpu: 0.0.40
codegen_flags: <defaults>
</compile_context>

<pallas_src>
import jax
import jax.numpy as jnp
from jax.experimental import pallas as pl
from jax.experimental.pallas import tpu as pltpu


# ----------------------------- configuration --------------------------------
IN_DIM = 16
HIDDEN_DIM = 64
OUT_DIM = 32
N_LAYERS = 4
MAX_TM = 2048       # upper bound on token tile (rows per grid step); multiple of 8
TARGET_STEPS = 2    # keep >= 2 grid steps so both v7x TensorCores get work


# ------------------------------- kernel -------------------------------------
def approximator_kernel(
    x_ref,       # [TM, IN_DIM]            f32
    wi_ref,      # [IN_DIM, HIDDEN]        bf16
    bi_ref,      # [1, HIDDEN]             f32
    w1_ref,      # [L, HIDDEN, HIDDEN]     bf16  (RMSNorm scale pre-folded)
    b1_ref,      # [L, 1, HIDDEN]          f32
    w2_ref,      # [L, HIDDEN, HIDDEN]     bf16
    b2_ref,      # [L, 1, HIDDEN]          f32
    wo_ref,      # [HIDDEN, OUT_DIM]       bf16
    bo_ref,      # [1, OUT_DIM]            f32
    o_ref,       # [TM, OUT_DIM]           f32
):
    # in_proj: bf16 MXU matmul, f32 accumulation
    x = x_ref[...].astype(jnp.bfloat16)
    h = jnp.dot(x, wi_ref[...], preferred_element_type=jnp.float32) + bi_ref[...]

    # residual MLP blocks (static unroll over n_layers)
    for l in range(N_LAYERS):
        # RMSNorm (eps = 1e-6) in float32; the learned scale is folded into w1.
        rrms = jax.lax.rsqrt(jnp.mean(h * h, axis=-1, keepdims=True) + 1e-6)
        y = (h * rrms).astype(jnp.bfloat16)                  # [TM, HIDDEN]

        # MLPEmbedder: Linear -> SiLU -> Linear (bf16 matmuls, f32 accumulate)
        z = jnp.dot(y, w1_ref[l], preferred_element_type=jnp.float32) + b1_ref[l]
        z = z * jax.nn.sigmoid(z)                            # SiLU in f32
        z = jnp.dot(z.astype(jnp.bfloat16), w2_ref[l],
                    preferred_element_type=jnp.float32) + b2_ref[l]

        h = h + z                                            # residual (f32)

    # out_proj
    out = jnp.dot(h.astype(jnp.bfloat16), wo_ref[...],
                  preferred_element_type=jnp.float32) + bo_ref[...]
    o_ref[...] = out.astype(o_ref.dtype)


# ------------------------------ wrapper --------------------------------------
def _round_up(n, m):
    return (n + m - 1) // m * m


def _cdiv(a, b):
    return -(-a // b)


@jax.jit
def approximator_forward(x, params):
    """x: [B, S, IN_DIM] float32 -> [B, S, OUT_DIM] float32."""
    B, S, _ = x.shape
    M = B * S

    # Token tile selection:
    #   * at least TARGET_STEPS grid steps (v7x megacore balance, pipeline overlap),
    #   * even step count when M is large (both v7x TCs stay busy),
    #   * TM capped at MAX_TM (multiple of 8),
    #   * tail padding bounded to < 8 rows per step.
    steps = max(TARGET_STEPS, _cdiv(M, MAX_TM))
    steps += steps % 2
    TM = min(MAX_TM, _round_up(_cdiv(M, steps), 8))
    Mpad = _round_up(M, TM)

    x2d = x.reshape(M, IN_DIM)
    if Mpad != M:
        x2d = jnp.pad(x2d, ((0, Mpad - M), (0, 0)))  # pad tail tokens; sliced off below

    wi, bi, scale, w1, b1, w2, b2, wo, bo = params

    # Fold the RMSNorm scale into w1 (f32 fold, then one bf16 cast):
    #   (h * rrms * scale) @ w1  ==  (h * rrms) @ (diag(scale) @ w1)
    w1_folded = scale.reshape(N_LAYERS, HIDDEN_DIM, 1) * w1

    # bf16 weights for the MXU; biases stay f32 (added post-accumulation).
    wi_b = wi.astype(jnp.bfloat16)
    w1_b = w1_folded.astype(jnp.bfloat16)
    w2_b = w2.astype(jnp.bfloat16)
    wo_b = wo.astype(jnp.bfloat16)

    # Grid-invariant full-array blocks for the (tiny) weights/biases.
    full = lambda a: pl.BlockSpec(a.shape, lambda i: (0,) * a.ndim)

    out2d = pl.pallas_call(
        approximator_kernel,
        out_shape=jax.ShapeDtypeStruct((Mpad, OUT_DIM), x.dtype),
        grid=(Mpad // TM,),
        in_specs=[
            pl.BlockSpec((TM, IN_DIM), lambda i: (i, 0)),    # x tile
            full(wi_b),
            full(bi),
            full(w1_b),
            full(b1),
            full(w2_b),
            full(b2),
            full(wo_b),
            full(bo),
        ],
        out_specs=pl.BlockSpec((TM, OUT_DIM), lambda i: (i, 0)),
        compiler_params=pltpu.CompilerParams(
            dimension_semantics=("parallel",),
            vmem_limit_bytes=32 * 1024 * 1024,
        ),
    )(x2d, wi_b, bi, w1_b, b1, w2_b, b2, wo_b, bo)

    return out2d[:M].reshape(B, S, OUT_DIM)


# ----------------------- deterministic parameter init ------------------------
def init_params(key):
    ks = jax.random.split(key, 8)
    wi = 0.05 * jax.random.normal(ks[0], (IN_DIM, HIDDEN_DIM), jnp.float32)
    bi = 0.05 * jax.random.normal(ks[1], (1, HIDDEN_DIM), jnp.float32)
    # RMSNorm scales init to ones (matches nn.Parameter(torch.ones(dim)))
    scale = jnp.ones((N_LAYERS, 1, HIDDEN_DIM), jnp.float32)
    w1 = 0.05 * jax.random.normal(ks[2], (N_LAYERS, HIDDEN_DIM, HIDDEN_DIM), jnp.float32)
    b1 = 0.05 * jax.random.normal(ks[3], (N_LAYERS, 1, HIDDEN_DIM), jnp.float32)
    w2 = 0.05 * jax.random.normal(ks[4], (N_LAYERS, HIDDEN_DIM, HIDDEN_DIM), jnp.float32)
    b2 = 0.05 * jax.random.normal(ks[5], (N_LAYERS, 1, HIDDEN_DIM), jnp.float32)
    wo = 0.05 * jax.random.normal(ks[6], (HIDDEN_DIM, OUT_DIM), jnp.float32)
    bo = 0.05 * jax.random.normal(ks[7], (1, OUT_DIM), jnp.float32)
    return (wi, bi, scale, w1, b1, w2, b2, wo, bo)


# ------------------------- pure-JAX f32 reference -----------------------------
def approximator_ref(x, params):
    wi, bi, scale, w1, b1, w2, b2, wo, bo = params
    h = x @ wi + bi[0]
    for l in range(N_LAYERS):
        rrms = jax.lax.rsqrt(jnp.mean(h * h, axis=-1, keepdims=True) + 1e-6)
        y = h * rrms * scale[l, 0]
        z = y @ w1[l] + b1[l, 0]
        z = jax.nn.silu(z)
        z = z @ w2[l] + b2[l, 0]
        h = h + z
    return h @ wo + bo[0]


# --------------------------------- main ---------------------------------------
if __name__ == "__main__":
    key = jax.random.PRNGKey(0)
    kx, kx2, kp = jax.random.split(key, 3)
    params = init_params(kp)

    # Small test (module-consistent shapes): M=16 -> TM=8, grid=2.
    B, S = 2, 8
    x = jax.random.normal(kx, (B, S, IN_DIM), jnp.float32)
    out = jax.block_until_ready(approximator_forward(x, params))
    ref = approximator_ref(x, params)
    assert out.shape == (B, S, OUT_DIM)
    # bf16 matmul inputs (f32 accumulation) -> loosened tolerance vs f32 reference
    assert jnp.allclose(out, ref, atol=2e-2, rtol=2e-2), "mismatch vs reference (small)"

    # Second test exercising multi-step grid + tail padding (M % TM != 0).
    B2, S2 = 3, 171  # M = 513 -> TM = 264, Mpad = 528, grid = 2
    x2 = jax.random.normal(kx2, (B2, S2, IN_DIM), jnp.float32)
    out2 = jax.block_until_ready(approximator_forward(x2, params))
    ref2 = approximator_ref(x2, params)
    assert out2.shape == (B2, S2, OUT_DIM)
    assert jnp.allclose(out2, ref2, atol=2e-2, rtol=2e-2), "mismatch vs reference (padded)"

    print("KERNEL_OK")
</pallas_src>

<mosaic_0001>
module attributes {stable_mosaic.version = 11 : i64} {
  func.func @approximator_kernel(%arg0: i32, %arg1: memref<8x16xf32, #tpu.memory_space<vmem>>, %arg2: memref<16x64xbf16, #tpu.memory_space<vmem>>, %arg3: memref<1x64xf32, #tpu.memory_space<vmem>>, %arg4: memref<4x64x64xbf16, #tpu.memory_space<vmem>>, %arg5: memref<4x1x64xf32, #tpu.memory_space<vmem>>, %arg6: memref<4x64x64xbf16, #tpu.memory_space<vmem>>, %arg7: memref<4x1x64xf32, #tpu.memory_space<vmem>>, %arg8: memref<64x32xbf16, #tpu.memory_space<vmem>>, %arg9: memref<1x32xf32, #tpu.memory_space<vmem>>, %arg10: memref<8x32xf32, #tpu.memory_space<vmem>>) attributes {dimension_semantics = [#tpu.dimension_semantics<parallel>], iteration_bounds = array<i64: 2>, scalar_prefetch = 0 : i64, scratch_operands = 0 : i64, tpu.core_type = #tpu.core_type<tc>, window_params = [{transform_indices = @transform_0, window_bounds = array<i64: 8, 16>}, {pipeline_mode = #tpu.pipeline_mode<synchronous>, transform_indices = @transform_1, window_bounds = array<i64: 16, 64>}, {pipeline_mode = #tpu.pipeline_mode<synchronous>, transform_indices = @transform_2, window_bounds = array<i64: 1, 64>}, {pipeline_mode = #tpu.pipeline_mode<synchronous>, transform_indices = @transform_3, window_bounds = array<i64: 4, 64, 64>}, {pipeline_mode = #tpu.pipeline_mode<synchronous>, transform_indices = @transform_4, window_bounds = array<i64: 4, 1, 64>}, {pipeline_mode = #tpu.pipeline_mode<synchronous>, transform_indices = @transform_5, window_bounds = array<i64: 4, 64, 64>}, {pipeline_mode = #tpu.pipeline_mode<synchronous>, transform_indices = @transform_6, window_bounds = array<i64: 4, 1, 64>}, {pipeline_mode = #tpu.pipeline_mode<synchronous>, transform_indices = @transform_7, window_bounds = array<i64: 64, 32>}, {pipeline_mode = #tpu.pipeline_mode<synchronous>, transform_indices = @transform_8, window_bounds = array<i64: 1, 32>}, {transform_indices = @transform_9, window_bounds = array<i64: 8, 32>}]} {
    %c0 = arith.constant 0 : index
    %c0_0 = arith.constant 0 : index
    %0 = vector.load %arg1[%c0, %c0_0] : memref<8x16xf32, #tpu.memory_space<vmem>>, vector<8x16xf32>
    %1 = arith.truncf %0 : vector<8x16xf32> to vector<8x16xbf16>
    %c0_1 = arith.constant 0 : index
    %c0_2 = arith.constant 0 : index
    %2 = vector.load %arg2[%c0_1, %c0_2] : memref<16x64xbf16, #tpu.memory_space<vmem>>, vector<16x64xbf16>
    %cst = arith.constant dense<0.000000e+00> : vector<8x64xf32>
    %3 = tpu.matmul %1, %2, %cst {dimension_numbers = #tpu.dot_dimension_numbers<[1], [0], [0], [1], [0, 0, 1, 1], [], []>} : vector<8x16xbf16>, vector<16x64xbf16>, vector<8x64xf32> -> vector<8x64xf32>
    %c0_3 = arith.constant 0 : index
    %c0_4 = arith.constant 0 : index
    %4 = vector.load %arg3[%c0_3, %c0_4] : memref<1x64xf32, #tpu.memory_space<vmem>>, vector<1x64xf32>
    %5 = vector.broadcast %4 : vector<1x64xf32> to vector<8x64xf32>
    %6 = arith.addf %3, %5 : vector<8x64xf32>
    %7 = arith.mulf %6, %6 : vector<8x64xf32>
    %cst_5 = arith.constant dense<0.000000e+00> : vector<8xf32>
    %8 = vector.multi_reduction <add>, %7, %cst_5 [1] : vector<8x64xf32> to vector<8xf32>
    %9 = vector.shape_cast %8 : vector<8xf32> to vector<8x1xf32>
    %cst_6 = arith.constant 6.400000e+01 : f32
    %10 = vector.broadcast %cst_6 : f32 to vector<8x1xf32>
    %11 = arith.divf %9, %10 : vector<8x1xf32>
    %cst_7 = arith.constant 9.99999997E-7 : f32
    %12 = vector.broadcast %cst_7 : f32 to vector<8x1xf32>
    %13 = arith.addf %11, %12 : vector<8x1xf32>
    %14 = math.rsqrt %13 : vector<8x1xf32>
    %15 = vector.broadcast %14 : vector<8x1xf32> to vector<8x64xf32>
    %16 = arith.mulf %6, %15 : vector<8x64xf32>
    %17 = arith.truncf %16 : vector<8x64xf32> to vector<8x64xbf16>
    %c0_8 = arith.constant 0 : index
    %c0_9 = arith.constant 0 : index
    %c0_10 = arith.constant 0 : index
    %18 = vector.load %arg4[%c0_8, %c0_9, %c0_10] : memref<4x64x64xbf16, #tpu.memory_space<vmem>>, vector<1x64x64xbf16>
    %19 = vector.shape_cast %18 : vector<1x64x64xbf16> to vector<64x64xbf16>
    %cst_11 = arith.constant dense<0.000000e+00> : vector<8x64xf32>
    %20 = tpu.matmul %17, %19, %cst_11 {dimension_numbers = #tpu.dot_dimension_numbers<[1], [0], [0], [1], [0, 0, 1, 1], [], []>} : vector<8x64xbf16>, vector<64x64xbf16>, vector<8x64xf32> -> vector<8x64xf32>
    %c0_12 = arith.constant 0 : index
    %c0_13 = arith.constant 0 : index
    %c0_14 = arith.constant 0 : index
    %21 = vector.load %arg5[%c0_12, %c0_13, %c0_14] : memref<4x1x64xf32, #tpu.memory_space<vmem>>, vector<1x1x64xf32>
    %22 = vector.shape_cast %21 : vector<1x1x64xf32> to vector<1x64xf32>
    %23 = vector.broadcast %22 : vector<1x64xf32> to vector<8x64xf32>
    %24 = arith.addf %20, %23 : vector<8x64xf32>
    %25 = arith.negf %24 : vector<8x64xf32>
    %26 = math.exp %25 : vector<8x64xf32>
    %cst_15 = arith.constant 1.000000e+00 : f32
    %27 = vector.broadcast %cst_15 : f32 to vector<8x64xf32>
    %28 = arith.addf %27, %26 : vector<8x64xf32>
    %29 = arith.divf %27, %28 : vector<8x64xf32>
    %30 = arith.mulf %24, %29 : vector<8x64xf32>
    %31 = arith.truncf %30 : vector<8x64xf32> to vector<8x64xbf16>
    %c0_16 = arith.constant 0 : index
    %c0_17 = arith.constant 0 : index
    %c0_18 = arith.constant 0 : index
    %32 = vector.load %arg6[%c0_16, %c0_17, %c0_18] : memref<4x64x64xbf16, #tpu.memory_space<vmem>>, vector<1x64x64xbf16>
    %33 = vector.shape_cast %32 : vector<1x64x64xbf16> to vector<64x64xbf16>
    %cst_19 = arith.constant dense<0.000000e+00> : vector<8x64xf32>
    %34 = tpu.matmul %31, %33, %cst_19 {dimension_numbers = #tpu.dot_dimension_numbers<[1], [0], [0], [1], [0, 0, 1, 1], [], []>} : vector<8x64xbf16>, vector<64x64xbf16>, vector<8x64xf32> -> vector<8x64xf32>
    %c0_20 = arith.constant 0 : index
    %c0_21 = arith.constant 0 : index
    %c0_22 = arith.constant 0 : index
    %35 = vector.load %arg7[%c0_20, %c0_21, %c0_22] : memref<4x1x64xf32, #tpu.memory_space<vmem>>, vector<1x1x64xf32>
    %36 = vector.shape_cast %35 : vector<1x1x64xf32> to vector<1x64xf32>
    %37 = vector.broadcast %36 : vector<1x64xf32> to vector<8x64xf32>
    %38 = arith.addf %34, %37 : vector<8x64xf32>
    %39 = arith.addf %6, %38 : vector<8x64xf32>
    %40 = arith.mulf %39, %39 : vector<8x64xf32>
    %cst_23 = arith.constant dense<0.000000e+00> : vector<8xf32>
    %41 = vector.multi_reduction <add>, %40, %cst_23 [1] : vector<8x64xf32> to vector<8xf32>
    %42 = vector.shape_cast %41 : vector<8xf32> to vector<8x1xf32>
    %cst_24 = arith.constant 6.400000e+01 : f32
    %43 = vector.broadcast %cst_24 : f32 to vector<8x1xf32>
    %44 = arith.divf %42, %43 : vector<8x1xf32>
    %cst_25 = arith.constant 9.99999997E-7 : f32
    %45 = vector.broadcast %cst_25 : f32 to vector<8x1xf32>
    %46 = arith.addf %44, %45 : vector<8x1xf32>
    %47 = math.rsqrt %46 : vector<8x1xf32>
    %48 = vector.broadcast %47 : vector<8x1xf32> to vector<8x64xf32>
    %49 = arith.mulf %39, %48 : vector<8x64xf32>
    %50 = arith.truncf %49 : vector<8x64xf32> to vector<8x64xbf16>
    %c1 = arith.constant 1 : index
    %c0_26 = arith.constant 0 : index
    %c0_27 = arith.constant 0 : index
    %51 = vector.load %arg4[%c1, %c0_26, %c0_27] : memref<4x64x64xbf16, #tpu.memory_space<vmem>>, vector<1x64x64xbf16>
    %52 = vector.shape_cast %51 : vector<1x64x64xbf16> to vector<64x64xbf16>
    %cst_28 = arith.constant dense<0.000000e+00> : vector<8x64xf32>
    %53 = tpu.matmul %50, %52, %cst_28 {dimension_numbers = #tpu.dot_dimension_numbers<[1], [0], [0], [1], [0, 0, 1, 1], [], []>} : vector<8x64xbf16>, vector<64x64xbf16>, vector<8x64xf32> -> vector<8x64xf32>
    %c1_29 = arith.constant 1 : index
    %c0_30 = arith.constant 0 : index
    %c0_31 = arith.constant 0 : index
    %54 = vector.load %arg5[%c1_29, %c0_30, %c0_31] : memref<4x1x64xf32, #tpu.memory_space<vmem>>, vector<1x1x64xf32>
    %55 = vector.shape_cast %54 : vector<1x1x64xf32> to vector<1x64xf32>
    %56 = vector.broadcast %55 : vector<1x64xf32> to vector<8x64xf32>
    %57 = arith.addf %53, %56 : vector<8x64xf32>
    %58 = arith.negf %57 : vector<8x64xf32>
    %59 = math.exp %58 : vector<8x64xf32>
    %cst_32 = arith.constant 1.000000e+00 : f32
    %60 = vector.broadcast %cst_32 : f32 to vector<8x64xf32>
    %61 = arith.addf %60, %59 : vector<8x64xf32>
    %62 = arith.divf %60, %61 : vector<8x64xf32>
    %63 = arith.mulf %57, %62 : vector<8x64xf32>
    %64 = arith.truncf %63 : vector<8x64xf32> to vector<8x64xbf16>
    %c1_33 = arith.constant 1 : index
    %c0_34 = arith.constant 0 : index
    %c0_35 = arith.constant 0 : index
    %65 = vector.load %arg6[%c1_33, %c0_34, %c0_35] : memref<4x64x64xbf16, #tpu.memory_space<vmem>>, vector<1x64x64xbf16>
    %66 = vector.shape_cast %65 : vector<1x64x64xbf16> to vector<64x64xbf16>
    %cst_36 = arith.constant dense<0.000000e+00> : vector<8x64xf32>
    %67 = tpu.matmul %64, %66, %cst_36 {dimension_numbers = #tpu.dot_dimension_numbers<[1], [0], [0], [1], [0, 0, 1, 1], [], []>} : vector<8x64xbf16>, vector<64x64xbf16>, vector<8x64xf32> -> vector<8x64xf32>
    %c1_37 = arith.constant 1 : index
    %c0_38 = arith.constant 0 : index
    %c0_39 = arith.constant 0 : index
    %68 = vector.load %arg7[%c1_37, %c0_38, %c0_39] : memref<4x1x64xf32, #tpu.memory_space<vmem>>, vector<1x1x64xf32>
    %69 = vector.shape_cast %68 : vector<1x1x64xf32> to vector<1x64xf32>
    %70 = vector.broadcast %69 : vector<1x64xf32> to vector<8x64xf32>
    %71 = arith.addf %67, %70 : vector<8x64xf32>
    %72 = arith.addf %39, %71 : vector<8x64xf32>
    %73 = arith.mulf %72, %72 : vector<8x64xf32>
    %cst_40 = arith.constant dense<0.000000e+00> : vector<8xf32>
    %74 = vector.multi_reduction <add>, %73, %cst_40 [1] : vector<8x64xf32> to vector<8xf32>
    %75 = vector.shape_cast %74 : vector<8xf32> to vector<8x1xf32>
    %cst_41 = arith.constant 6.400000e+01 : f32
    %76 = vector.broadcast %cst_41 : f32 to vector<8x1xf32>
    %77 = arith.divf %75, %76 : vector<8x1xf32>
    %cst_42 = arith.constant 9.99999997E-7 : f32
    %78 = vector.broadcast %cst_42 : f32 to vector<8x1xf32>
    %79 = arith.addf %77, %78 : vector<8x1xf32>
    %80 = math.rsqrt %79 : vector<8x1xf32>
    %81 = vector.broadcast %80 : vector<8x1xf32> to vector<8x64xf32>
    %82 = arith.mulf %72, %81 : vector<8x64xf32>
    %83 = arith.truncf %82 : vector<8x64xf32> to vector<8x64xbf16>
    %c2 = arith.constant 2 : index
    %c0_43 = arith.constant 0 : index
    %c0_44 = arith.constant 0 : index
    %84 = vector.load %arg4[%c2, %c0_43, %c0_44] : memref<4x64x64xbf16, #tpu.memory_space<vmem>>, vector<1x64x64xbf16>
    %85 = vector.shape_cast %84 : vector<1x64x64xbf16> to vector<64x64xbf16>
    %cst_45 = arith.constant dense<0.000000e+00> : vector<8x64xf32>
    %86 = tpu.matmul %83, %85, %cst_45 {dimension_numbers = #tpu.dot_dimension_numbers<[1], [0], [0], [1], [0, 0, 1, 1], [], []>} : vector<8x64xbf16>, vector<64x64xbf16>, vector<8x64xf32> -> vector<8x64xf32>
    %c2_46 = arith.constant 2 : index
    %c0_47 = arith.constant 0 : index
    %c0_48 = arith.constant 0 : index
    %87 = vector.load %arg5[%c2_46, %c0_47, %c0_48] : memref<4x1x64xf32, #tpu.memory_space<vmem>>, vector<1x1x64xf32>
    %88 = vector.shape_cast %87 : vector<1x1x64xf32> to vector<1x64xf32>
    %89 = vector.broadcast %88 : vector<1x64xf32> to vector<8x64xf32>
    %90 = arith.addf %86, %89 : vector<8x64xf32>
    %91 = arith.negf %90 : vector<8x64xf32>
    %92 = math.exp %91 : vector<8x64xf32>
    %cst_49 = arith.constant 1.000000e+00 : f32
    %93 = vector.broadcast %cst_49 : f32 to vector<8x64xf32>
    %94 = arith.addf %93, %92 : vector<8x64xf32>
    %95 = arith.divf %93, %94 : vector<8x64xf32>
    %96 = arith.mulf %90, %95 : vector<8x64xf32>
    %97 = arith.truncf %96 : vector<8x64xf32> to vector<8x64xbf16>
    %c2_50 = arith.constant 2 : index
    %c0_51 = arith.constant 0 : index
    %c0_52 = arith.constant 0 : index
    %98 = vector.load %arg6[%c2_50, %c0_51, %c0_52] : memref<4x64x64xbf16, #tpu.memory_space<vmem>>, vector<1x64x64xbf16>
    %99 = vector.shape_cast %98 : vector<1x64x64xbf16> to vector<64x64xbf16>
    %cst_53 = arith.constant dense<0.000000e+00> : vector<8x64xf32>
    %100 = tpu.matmul %97, %99, %cst_53 {dimension_numbers = #tpu.dot_dimension_numbers<[1], [0], [0], [1], [0, 0, 1, 1], [], []>} : vector<8x64xbf16>, vector<64x64xbf16>, vector<8x64xf32> -> vector<8x64xf32>
    %c2_54 = arith.constant 2 : index
    %c0_55 = arith.constant 0 : index
    %c0_56 = arith.constant 0 : index
    %101 = vector.load %arg7[%c2_54, %c0_55, %c0_56] : memref<4x1x64xf32, #tpu.memory_space<vmem>>, vector<1x1x64xf32>
    %102 = vector.shape_cast %101 : vector<1x1x64xf32> to vector<1x64xf32>
    %103 = vector.broadcast %102 : vector<1x64xf32> to vector<8x64xf32>
    %104 = arith.addf %100, %103 : vector<8x64xf32>
    %105 = arith.addf %72, %104 : vector<8x64xf32>
    %106 = arith.mulf %105, %105 : vector<8x64xf32>
    %cst_57 = arith.constant dense<0.000000e+00> : vector<8xf32>
    %107 = vector.multi_reduction <add>, %106, %cst_57 [1] : vector<8x64xf32> to vector<8xf32>
    %108 = vector.shape_cast %107 : vector<8xf32> to vector<8x1xf32>
    %cst_58 = arith.constant 6.400000e+01 : f32
    %109 = vector.broadcast %cst_58 : f32 to vector<8x1xf32>
    %110 = arith.divf %108, %109 : vector<8x1xf32>
    %cst_59 = arith.constant 9.99999997E-7 : f32
    %111 = vector.broadcast %cst_59 : f32 to vector<8x1xf32>
    %112 = arith.addf %110, %111 : vector<8x1xf32>
    %113 = math.rsqrt %112 : vector<8x1xf32>
    %114 = vector.broadcast %113 : vector<8x1xf32> to vector<8x64xf32>
    %115 = arith.mulf %105, %114 : vector<8x64xf32>
    %116 = arith.truncf %115 : vector<8x64xf32> to vector<8x64xbf16>
    %c3 = arith.constant 3 : index
    %c0_60 = arith.constant 0 : index
    %c0_61 = arith.constant 0 : index
    %117 = vector.load %arg4[%c3, %c0_60, %c0_61] : memref<4x64x64xbf16, #tpu.memory_space<vmem>>, vector<1x64x64xbf16>
    %118 = vector.shape_cast %117 : vector<1x64x64xbf16> to vector<64x64xbf16>
    %cst_62 = arith.constant dense<0.000000e+00> : vector<8x64xf32>
    %119 = tpu.matmul %116, %118, %cst_62 {dimension_numbers = #tpu.dot_dimension_numbers<[1], [0], [0], [1], [0, 0, 1, 1], [], []>} : vector<8x64xbf16>, vector<64x64xbf16>, vector<8x64xf32> -> vector<8x64xf32>
    %c3_63 = arith.constant 3 : index
    %c0_64 = arith.constant 0 : index
    %c0_65 = arith.constant 0 : index
    %120 = vector.load %arg5[%c3_63, %c0_64, %c0_65] : memref<4x1x64xf32, #tpu.memory_space<vmem>>, vector<1x1x64xf32>
    %121 = vector.shape_cast %120 : vector<1x1x64xf32> to vector<1x64xf32>
    %122 = vector.broadcast %121 : vector<1x64xf32> to vector<8x64xf32>
    %123 = arith.addf %119, %122 : vector<8x64xf32>
    %124 = arith.negf %123 : vector<8x64xf32>
    %125 = math.exp %124 : vector<8x64xf32>
    %cst_66 = arith.constant 1.000000e+00 : f32
    %126 = vector.broadcast %cst_66 : f32 to vector<8x64xf32>
    %127 = arith.addf %126, %125 : vector<8x64xf32>
    %128 = arith.divf %126, %127 : vector<8x64xf32>
    %129 = arith.mulf %123, %128 : vector<8x64xf32>
    %130 = arith.truncf %129 : vector<8x64xf32> to vector<8x64xbf16>
    %c3_67 = arith.constant 3 : index
    %c0_68 = arith.constant 0 : index
    %c0_69 = arith.constant 0 : index
    %131 = vector.load %arg6[%c3_67, %c0_68, %c0_69] : memref<4x64x64xbf16, #tpu.memory_space<vmem>>, vector<1x64x64xbf16>
    %132 = vector.shape_cast %131 : vector<1x64x64xbf16> to vector<64x64xbf16>
    %cst_70 = arith.constant dense<0.000000e+00> : vector<8x64xf32>
    %133 = tpu.matmul %130, %132, %cst_70 {dimension_numbers = #tpu.dot_dimension_numbers<[1], [0], [0], [1], [0, 0, 1, 1], [], []>} : vector<8x64xbf16>, vector<64x64xbf16>, vector<8x64xf32> -> vector<8x64xf32>
    %c3_71 = arith.constant 3 : index
    %c0_72 = arith.constant 0 : index
    %c0_73 = arith.constant 0 : index
    %134 = vector.load %arg7[%c3_71, %c0_72, %c0_73] : memref<4x1x64xf32, #tpu.memory_space<vmem>>, vector<1x1x64xf32>
    %135 = vector.shape_cast %134 : vector<1x1x64xf32> to vector<1x64xf32>
    %136 = vector.broadcast %135 : vector<1x64xf32> to vector<8x64xf32>
    %137 = arith.addf %133, %136 : vector<8x64xf32>
    %138 = arith.addf %105, %137 : vector<8x64xf32>
    %139 = arith.truncf %138 : vector<8x64xf32> to vector<8x64xbf16>
    %c0_74 = arith.constant 0 : index
    %c0_75 = arith.constant 0 : index
    %140 = vector.load %arg8[%c0_74, %c0_75] : memref<64x32xbf16, #tpu.memory_space<vmem>>, vector<64x32xbf16>
    %cst_76 = arith.constant dense<0.000000e+00> : vector<8x32xf32>
    %141 = tpu.matmul %139, %140, %cst_76 {dimension_numbers = #tpu.dot_dimension_numbers<[1], [0], [0], [1], [0, 0, 1, 1], [], []>} : vector<8x64xbf16>, vector<64x32xbf16>, vector<8x32xf32> -> vector<8x32xf32>
    %c0_77 = arith.constant 0 : index
    %c0_78 = arith.constant 0 : index
    %142 = vector.load %arg9[%c0_77, %c0_78] : memref<1x32xf32, #tpu.memory_space<vmem>>, vector<1x32xf32>
    %143 = vector.broadcast %142 : vector<1x32xf32> to vector<8x32xf32>
    %144 = arith.addf %141, %143 : vector<8x32xf32>
    %c0_79 = arith.constant 0 : index
    %c0_80 = arith.constant 0 : index
    %145 = vector.load %arg10[%c0_79, %c0_80] : memref<8x32xf32, #tpu.memory_space<vmem>>, vector<8x32xf32>
    tpu.vector_store %arg10[%c0_79, %c0_80], %144 {strides = array<i32>} : memref<8x32xf32, #tpu.memory_space<vmem>>, vector<8x32xf32>,
    return
  }
  func.func @transform_0(%arg0: i32) -> (i32, i32) {
    %c0_i32 = arith.constant 0 : i32
    %c0_i32_0 = arith.constant 0 : i32
    return %arg0, %c0_i32 : i32, i32
  }
  func.func @transform_1(%arg0: i32) -> (i32, i32) {
    %c0_i32 = arith.constant 0 : i32
    %c0_i32_0 = arith.constant 0 : i32
    %c0_i32_1 = arith.constant 0 : i32
    return %c0_i32, %c0_i32_0 : i32, i32
  }
  func.func @transform_2(%arg0: i32) -> (i32, i32) {
    %c0_i32 = arith.constant 0 : i32
    %c0_i32_0 = arith.constant 0 : i32
    %c0_i32_1 = arith.constant 0 : i32
    return %c0_i32, %c0_i32_0 : i32, i32
  }
  func.func @transform_3(%arg0: i32) -> (i32, i32, i32) {
    %c0_i32 = arith.constant 0 : i32
    %c0_i32_0 = arith.constant 0 : i32
    %c0_i32_1 = arith.constant 0 : i32
    %c0_i32_2 = arith.constant 0 : i32
    return %c0_i32, %c0_i32_0, %c0_i32_1 : i32, i32, i32
  }
  func.func @transform_4(%arg0: i32) -> (i32, i32, i32) {
    %c0_i32 = arith.constant 0 : i32
    %c0_i32_0 = arith.constant 0 : i32
    %c0_i32_1 = arith.constant 0 : i32
    %c0_i32_2 = arith.constant 0 : i32
    return %c0_i32, %c0_i32_0, %c0_i32_1 : i32, i32, i32
  }
  func.func @transform_5(%arg0: i32) -> (i32, i32, i32) {
    %c0_i32 = arith.constant 0 : i32
    %c0_i32_0 = arith.constant 0 : i32
    %c0_i32_1 = arith.constant 0 : i32
    %c0_i32_2 = arith.constant 0 : i32
    return %c0_i32, %c0_i32_0, %c0_i32_1 : i32, i32, i32
  }
  func.func @transform_6(%arg0: i32) -> (i32, i32, i32) {
    %c0_i32 = arith.constant 0 : i32
    %c0_i32_0 = arith.constant 0 : i32
    %c0_i32_1 = arith.constant 0 : i32
    %c0_i32_2 = arith.constant 0 : i32
    return %c0_i32, %c0_i32_0, %c0_i32_1 : i32, i32, i32
  }
  func.func @transform_7(%arg0: i32) -> (i32, i32) {
    %c0_i32 = arith.constant 0 : i32
    %c0_i32_0 = arith.constant 0 : i32
    %c0_i32_1 = arith.constant 0 : i32
    return %c0_i32, %c0_i32_0 : i32, i32
  }
  func.func @transform_8(%arg0: i32) -> (i32, i32) {
    %c0_i32 = arith.constant 0 : i32
    %c0_i32_0 = arith.constant 0 : i32
    %c0_i32_1 = arith.constant 0 : i32
    return %c0_i32, %c0_i32_0 : i32, i32
  }
  func.func @transform_9(%arg0: i32) -> (i32, i32) {
    %c0_i32 = arith.constant 0 : i32
    %c0_i32_0 = arith.constant 0 : i32
    return %arg0, %c0_i32 : i32, i32
  }
}

</mosaic_0001>

<llo_original>
// kernel: approximator_forward.1
$region0: #{approximator_forward.1}
  #allocation0 [shape = 'u32[]', space=smem, size = 0x4, offset = 0x4, fixed_abs, tag = 'smem constant byte address 0x4 - core index']
  #allocation1 [shape = 'u32[72,128]{1,0:T(1,128)}', space=vmem, size = 0x9000, scoped, tag = 'internal scratch']
  %s0 = inlined_call_operand.vmem [shape: f32[16,16], index: 0, kind: input, shape index: {}]
  %s1 = inlined_call_operand.vmem [shape: bf16[16,64], index: 1, kind: input, shape index: {}]
  %s2 = inlined_call_operand.vmem [shape: f32[1,64], index: 2, kind: input, shape index: {}]
  %s3 = inlined_call_operand.vmem [shape: bf16[4,64,64], index: 3, kind: input, shape index: {}]
  %s4 = inlined_call_operand.vmem [shape: f32[4,1,64], index: 4, kind: input, shape index: {}]
  %s5 = inlined_call_operand.vmem [shape: bf16[4,64,64], index: 5, kind: input, shape index: {}]
  %s6 = inlined_call_operand.vmem [shape: f32[4,1,64], index: 6, kind: input, shape index: {}]
  %s7 = inlined_call_operand.vmem [shape: bf16[64,32], index: 7, kind: input, shape index: {}]
  %s8 = inlined_call_operand.vmem [shape: f32[1,32], index: 8, kind: input, shape index: {}]
  %s9 = inlined_call_operand.hbm [shape: f32[16,32], index: 9, kind: output, shape index: {}]
  %s10 = sld [smem:[#allocation0]]
  $region69: #{approximator_forward.1} parent=0
    _
  %s12 = ssub.s32 1, %s10
  %s13 = scalar_select 0, %s12, %s10
  $region1: #{approximator_forward.1} parent=0
    #allocation2 [shape = 'u8[8192]{0}', space=vmem, size = 0x2000, scoped, tag = 'output window, operand 0']
    #allocation3 [shape = 's32[2]{0}', space=sflag, size = 0x8, scoped, tag = 'scoped memory for approximator_forward.1']
    %14 = vsyncpa [#allocation3], 0
    %s15 = scalar_lea.sflag [#allocation3], 1
    %16 = vsyncpa %s15, 0
    loop: start=0, step=1, limit=4
    $region2: #{approximator_forward.1} parent=1 // loop_pre_header
      _
    $region3: #{approximator_forward.1} parent=1 // loop_header
      %s18 = sphi 0, %s22
      %p19 = scmp.ge.s32.totalorder %s18, 4
      %s28 = sphi 0, %s30
      %s31 = sphi 0, %s28
      %s32 = sphi 0, %s31
      %s48 = sphi 0, %s32
      %s52 = sphi 0, %s52
      %s54 = sphi 0, %s52
      %s55 = sphi 0, %s54
      %s69 = sphi 0, %s55
      %s73 = sphi 0, %s73
      %s75 = sphi 0, %s73
      %s76 = sphi 0, %s75
      %s90 = sphi 0, %s76
      %s94 = sphi 0, %s94
      %s96 = sphi 0, %s94
      %s97 = sphi 0, %s96
      %s111 = sphi 0, %s97
      %s115 = sphi 0, %s115
      %s117 = sphi 0, %s115
      %s118 = sphi 0, %s117
      %s132 = sphi 0, %s118
      %s136 = sphi 0, %s136
      %s138 = sphi 0, %s136
      %s139 = sphi 0, %s138
      %s153 = sphi 0, %s139
      %s157 = sphi 0, %s157
      %s159 = sphi 0, %s157
      %s160 = sphi 0, %s159
      %s174 = sphi 0, %s160
      %s178 = sphi 0, %s178
      %s180 = sphi 0, %s178
      %s181 = sphi 0, %s180
      %s195 = sphi 0, %s181
      %s199 = sphi 0, %s199
      %s201 = sphi 0, %s199
      %s202 = sphi 0, %s201
      %s216 = sphi 0, %s202
      %s222 = sphi 0, %s224
      %s225 = sphi 0, %s222
      %s226 = sphi 0, %s225
      %s242 = sphi 0, %s226
    $region4: #{approximator_forward.1} parent=1 // loop_header_branch
      %21 = sbr.rel (%p19) target = $region8
    $region5: #{approximator_forward.1} parent=1 // loop_body
      %s23 = ssub.s32 %s18, 1
      %s24 = ssub.s32 %s18, 2
      %s25 = sadd.s32 %s18, 1
      %s26 = ssub.s32 %s18, %s25
      %p27 = scmp.eq.s32.totalorder %s26, 0
      %s29 = sadd.s32 %s28, 1
      %s30 = scalar_select %p27, %s28, %s29
      %p33 = pneg %p27
      %p34 = scmp.eq.s32.totalorder %s18, 1
      %p35 = por %p33, %p34
      %p36 = scmp.ne.s32.totalorder %s28, %s31
      %p37 = scmp.eq.s32.totalorder %s18, 0
      %p38 = por %p36, %p37
      %p39 = scmp.ne.s32.totalorder %s28, %s31
      %p40 = scmp.eq.s32.totalorder %s23, 1
      %p41 = por %p39, %p40
      %p42 = scmp.ne.s32.totalorder %s31, %s32
      %p43 = scmp.eq.s32.totalorder %s23, 0
      %p44 = por %p42, %p43
      %p45 = scmp.ne.s32.totalorder %s31, %s32
      %p46 = scmp.eq.s32.totalorder %s24, 1
      %p47 = por %p45, %p46
      %p49 = scmp.ne.s32.totalorder %s32, %s48
      %p50 = scmp.eq.s32.totalorder %s24, 0
      %p51 = por %p49, %p50
      %s53 = sadd.s32 %s52, 1
      %p56 = scmp.eq.s32.totalorder %s18, 1
      %p57 = scmp.ne.s32.totalorder %s52, %s54
      %p58 = scmp.eq.s32.totalorder %s18, 0
      %p59 = por %p57, %p58
      %p60 = scmp.ne.s32.totalorder %s52, %s54
      %p61 = scmp.eq.s32.totalorder %s23, 1
      %p62 = por %p60, %p61
      %p63 = scmp.ne.s32.totalorder %s54, %s55
      %p64 = scmp.eq.s32.totalorder %s23, 0
      %p65 = por %p63, %p64
      %p66 = scmp.ne.s32.totalorder %s54, %s55
      %p67 = scmp.eq.s32.totalorder %s24, 1
      %p68 = por %p66, %p67
      %p70 = scmp.ne.s32.totalorder %s55, %s69
      %p71 = scmp.eq.s32.totalorder %s24, 0
      %p72 = por %p70, %p71
      %s74 = sadd.s32 %s73, 1
      %p77 = scmp.eq.s32.totalorder %s18, 1
      %p78 = scmp.ne.s32.totalorder %s73, %s75
      %p79 = scmp.eq.s32.totalorder %s18, 0
      %p80 = por %p78, %p79
      %p81 = scmp.ne.s32.totalorder %s73, %s75
      %p82 = scmp.eq.s32.totalorder %s23, 1
      %p83 = por %p81, %p82
      %p84 = scmp.ne.s32.totalorder %s75, %s76
      %p85 = scmp.eq.s32.totalorder %s23, 0
      %p86 = por %p84, %p85
      %p87 = scmp.ne.s32.totalorder %s75, %s76
      %p88 = scmp.eq.s32.totalorder %s24, 1
      %p89 = por %p87, %p88
      %p91 = scmp.ne.s32.totalorder %s76, %s90
      %p92 = scmp.eq.s32.totalorder %s24, 0
      %p93 = por %p91, %p92
      %s95 = sadd.s32 %s94, 1
      %p98 = scmp.eq.s32.totalorder %s18, 1
      %p99 = scmp.ne.s32.totalorder %s94, %s96
      %p100 = scmp.eq.s32.totalorder %s18, 0
      %p101 = por %p99, %p100
      %p102 = scmp.ne.s32.totalorder %s94, %s96
      %p103 = scmp.eq.s32.totalorder %s23, 1
      %p104 = por %p102, %p103
      %p105 = scmp.ne.s32.totalorder %s96, %s97
      %p106 = scmp.eq.s32.totalorder %s23, 0
      %p107 = por %p105, %p106
      %p108 = scmp.ne.s32.totalorder %s96, %s97
      %p109 = scmp.eq.s32.totalorder %s24, 1
      %p110 = por %p108, %p109
      %p112 = scmp.ne.s32.totalorder %s97, %s111
      %p113 = scmp.eq.s32.totalorder %s24, 0
      %p114 = por %p112, %p113
      %s116 = sadd.s32 %s115, 1
      %p119 = scmp.eq.s32.totalorder %s18, 1
      %p120 = scmp.ne.s32.totalorder %s115, %s117
      %p121 = scmp.eq.s32.totalorder %s18, 0
      %p122 = por %p120, %p121
      %p123 = scmp.ne.s32.totalorder %s115, %s117
      %p124 = scmp.eq.s32.totalorder %s23, 1
      %p125 = por %p123, %p124
      %p126 = scmp.ne.s32.totalorder %s117, %s118
      %p127 = scmp.eq.s32.totalorder %s23, 0
      %p128 = por %p126, %p127
      %p129 = scmp.ne.s32.totalorder %s117, %s118
      %p130 = scmp.eq.s32.totalorder %s24, 1
      %p131 = por %p129, %p130
      %p133 = scmp.ne.s32.totalorder %s118, %s132
      %p134 = scmp.eq.s32.totalorder %s24, 0
      %p135 = por %p133, %p134
      %s137 = sadd.s32 %s136, 1
      %p140 = scmp.eq.s32.totalorder %s18, 1
      %p141 = scmp.ne.s32.totalorder %s136, %s138
      %p142 = scmp.eq.s32.totalorder %s18, 0
      %p143 = por %p141, %p142
      %p144 = scmp.ne.s32.totalorder %s136, %s138
      %p145 = scmp.eq.s32.totalorder %s23, 1
      %p146 = por %p144, %p145
      %p147 = scmp.ne.s32.totalorder %s138, %s139
      %p148 = scmp.eq.s32.totalorder %s23, 0
      %p149 = por %p147, %p148
      %p150 = scmp.ne.s32.totalorder %s138, %s139
      %p151 = scmp.eq.s32.totalorder %s24, 1
      %p152 = por %p150, %p151
      %p154 = scmp.ne.s32.totalorder %s139, %s153
      %p155 = scmp.eq.s32.totalorder %s24, 0
      %p156 = por %p154, %p155
      %s158 = sadd.s32 %s157, 1
      %p161 = scmp.eq.s32.totalorder %s18, 1
      %p162 = scmp.ne.s32.totalorder %s157, %s159
      %p163 = scmp.eq.s32.totalorder %s18, 0
      %p164 = por %p162, %p163
      %p165 = scmp.ne.s32.totalorder %s157, %s159
      %p166 = scmp.eq.s32.totalorder %s23, 1
      %p167 = por %p165, %p166
      %p168 = scmp.ne.s32.totalorder %s159, %s160
      %p169 = scmp.eq.s32.totalorder %s23, 0
      %p170 = por %p168, %p169
      %p171 = scmp.ne.s32.totalorder %s159, %s160
      %p172 = scmp.eq.s32.totalorder %s24, 1
      %p173 = por %p171, %p172
      %p175 = scmp.ne.s32.totalorder %s160, %s174
      %p176 = scmp.eq.s32.totalorder %s24, 0
      %p177 = por %p175, %p176
      %s179 = sadd.s32 %s178, 1
      %p182 = scmp.eq.s32.totalorder %s18, 1
      %p183 = scmp.ne.s32.totalorder %s178, %s180
      %p184 = scmp.eq.s32.totalorder %s18, 0
      %p185 = por %p183, %p184
      %p186 = scmp.ne.s32.totalorder %s178, %s180
      %p187 = scmp.eq.s32.totalorder %s23, 1
      %p188 = por %p186, %p187
      %p189 = scmp.ne.s32.totalorder %s180, %s181
      %p190 = scmp.eq.s32.totalorder %s23, 0
      %p191 = por %p189, %p190
      %p192 = scmp.ne.s32.totalorder %s180, %s181
      %p193 = scmp.eq.s32.totalorder %s24, 1
      %p194 = por %p192, %p193
      %p196 = scmp.ne.s32.totalorder %s181, %s195
      %p197 = scmp.eq.s32.totalorder %s24, 0
      %p198 = por %p196, %p197
      %s200 = sadd.s32 %s199, 1
      %p203 = scmp.eq.s32.totalorder %s18, 1
      %p204 = scmp.ne.s32.totalorder %s199, %s201
      %p205 = scmp.eq.s32.totalorder %s18, 0
      %p206 = por %p204, %p205
      %p207 = scmp.ne.s32.totalorder %s199, %s201
      %p208 = scmp.eq.s32.totalorder %s23, 1
      %p209 = por %p207, %p208
      %p210 = scmp.ne.s32.totalorder %s201, %s202
      %p211 = scmp.eq.s32.totalorder %s23, 0
      %p212 = por %p210, %p211
      %p213 = scmp.ne.s32.totalorder %s201, %s202
      %p214 = scmp.eq.s32.totalorder %s24, 1
      %p215 = por %p213, %p214
      %p217 = scmp.ne.s32.totalorder %s202, %s216
      %p218 = scmp.eq.s32.totalorder %s24, 0
      %p219 = por %p217, %p218
      %s220 = ssub.s32 %s18, %s25
      %p221 = scmp.eq.s32.totalorder %s220, 0
      %s223 = sadd.s32 %s222, 1
      %s224 = scalar_select %p221, %s222, %s223
      %p227 = pneg %p221
      %p228 = scmp.eq.s32.totalorder %s18, 1
      %p229 = por %p227, %p228
      %p230 = scmp.ne.s32.totalorder %s222, %s225
      %p231 = scmp.eq.s32.totalorder %s18, 0
      %p232 = por %p230, %p231
      %p233 = scmp.ne.s32.totalorder %s222, %s225
      %p234 = scmp.eq.s32.totalorder %s23, 1
      %p235 = por %p233, %p234
      %p236 = scmp.ne.s32.totalorder %s225, %s226
      %p237 = scmp.eq.s32.totalorder %s23, 0
      %p238 = por %p236, %p237
      %p239 = scmp.ne.s32.totalorder %s225, %s226
      %p240 = scmp.eq.s32.totalorder %s24, 1
      %p241 = por %p239, %p240
      %p243 = scmp.ne.s32.totalorder %s226, %s242
      %p244 = scmp.eq.s32.totalorder %s24, 0
      %p245 = por %p243, %p244
      %p246 = scmp.le.s32.totalorder 1, %s18
      %p247 = scmp.lt.s32.totalorder %s18, 3
      %p248 = pnand %p246, %p247
      %p249 = pneg %p248
      // Predicated region
      $region9: #{approximator_forward.1} parent=5 // pred_check
        _
      $region10: #{approximator_forward.1} parent=5 // pred_check_branch
        %251 = sbr.rel (%p248) target = $region12
      $region11: #{approximator_forward.1} parent=5 // pred_region
        %s252 = ssub.s32 %s18, 1
        // Predicated region
        $region13: #{approximator_forward.1} parent=11 // pred_check
          %p253 = pneg %p65
        $region14: #{approximator_forward.1} parent=11 // pred_check_branch
          %255 = sbr.rel (%p253) target = $region16
        $region15: #{approximator_forward.1} parent=11 // pred_region
          _
        $region16: #{approximator_forward.1} parent=11 // pred_fallthru
          _
        // Predicated region
        $region17: #{approximator_forward.1} parent=11 // pred_check
          %p256 = pneg %p86
        $region18: #{approximator_forward.1} parent=11 // pred_check_branch
          %258 = sbr.rel (%p256) target = $region20
        $region19: #{approximator_forward.1} parent=11 // pred_region
          _
        $region20: #{approximator_forward.1} parent=11 // pred_fallthru
          _
        // Predicated region
        $region21: #{approximator_forward.1} parent=11 // pred_check
          %p259 = pneg %p107
        $region22: #{approximator_forward.1} parent=11 // pred_check_branch
          %261 = sbr.rel (%p259) target = $region24
        $region23: #{approximator_forward.1} parent=11 // pred_region
          _
        $region24: #{approximator_forward.1} parent=11 // pred_fallthru
          _
        // Predicated region
        $region25: #{approximator_forward.1} parent=11 // pred_check
          %p262 = pneg %p128
        $region26: #{approximator_forward.1} parent=11 // pred_check_branch
          %264 = sbr.rel (%p262) target = $region28
        $region27: #{approximator_forward.1} parent=11 // pred_region
          _
        $region28: #{approximator_forward.1} parent=11 // pred_fallthru
          _
        // Predicated region
        $region29: #{approximator_forward.1} parent=11 // pred_check
          %p265 = pneg %p149
        $region30: #{approximator_forward.1} parent=11 // pred_check_branch
          %267 = sbr.rel (%p265) target = $region32
        $region31: #{approximator_forward.1} parent=11 // pred_region
          _
        $region32: #{approximator_forward.1} parent=11 // pred_fallthru
          _
        // Predicated region
        $region33: #{approximator_forward.1} parent=11 // pred_check
          %p268 = pneg %p170
        $region34: #{approximator_forward.1} parent=11 // pred_check_branch
          %270 = sbr.rel (%p268) target = $region36
        $region35: #{approximator_forward.1} parent=11 // pred_region
          _
        $region36: #{approximator_forward.1} parent=11 // pred_fallthru
          _
        // Predicated region
        $region37: #{approximator_forward.1} parent=11 // pred_check
          %p271 = pneg %p191
        $region38: #{approximator_forward.1} parent=11 // pred_check_branch
          %273 = sbr.rel (%p271) target = $region40
        $region39: #{approximator_forward.1} parent=11 // pred_region
          _
        $region40: #{approximator_forward.1} parent=11 // pred_fallthru
          _
        // Predicated region
        $region41: #{approximator_forward.1} parent=11 // pred_check
          %p274 = pneg %p212
        $region42: #{approximator_forward.1} parent=11 // pred_check_branch
          %276 = sbr.rel (%p274) target = $region44
        $region43: #{approximator_forward.1} parent=11 // pred_region
          _
        $region44: #{approximator_forward.1} parent=11 // pred_fallthru
          _
      $region12: #{approximator_forward.1} parent=5 // pred_fallthru
        _
      %p277 = scmp.lt.s32.totalorder %s18, 2
      // Predicated region
      $region45: #{approximator_forward.1} parent=5 // pred_check
        %p278 = pneg %p277
      $region46: #{approximator_forward.1} parent=5 // pred_check_branch
        %280 = sbr.rel (%p278) target = $region48
      $region47: #{approximator_forward.1} parent=5 // pred_region
        // Predicated region
        $region49: #{approximator_forward.1} parent=47 // pred_check
          %p281 = pneg %p38
        $region50: #{approximator_forward.1} parent=47 // pred_check_branch
          %283 = sbr.rel (%p281) target = $region52
        $region51: #{approximator_forward.1} parent=47 // pred_region
          %p284 = scmp.lt.s32.totalorder %s18, 1
          %s285 = scalar_select %p284, %s18, 1
          %s286 = smul.addr %s285, 8
          %s287 = scalar_lea.vmem %s0, %s286
        $region52: #{approximator_forward.1} parent=47 // pred_fallthru
          _
      $region48: #{approximator_forward.1} parent=5 // pred_fallthru
        _
      %p288 = scmp.le.s32.totalorder 1, %s18
      %p289 = scmp.lt.s32.totalorder %s18, 3
      %p290 = pnand %p288, %p289
      %p291 = pneg %p290
      // Predicated region
      $region53: #{approximator_forward.1} parent=5 // pred_check
        _
      $region54: #{approximator_forward.1} parent=5 // pred_check_branch
        %293 = sbr.rel (%p290) target = $region56
      $region55: #{approximator_forward.1} parent=5 // pred_region
        %s294 = ssub.s32 %s18, 1
        %p295 = scmp.lt.s32.totalorder %s23, 1
        %s296 = scalar_select %p295, %s23, 1
        %s297 = smul.addr %s296, 8
        %s298 = scalar_lea.vmem %s0, %s297
        %p299 = pneg %p44
        %p300 = pneg %p41
        %p301 = pneg %p65
        %p302 = pneg %p62
        %p303 = pneg %p86
        %p304 = pneg %p83
        %p305 = pneg %p107
        %p306 = pneg %p104
        %p307 = pneg %p128
        %p308 = pneg %p125
        %p309 = pneg %p149
        %p310 = pneg %p146
        %p311 = pneg %p170
        %p312 = pneg %p167
        %p313 = pneg %p191
        %p314 = pneg %p188
        %p315 = pneg %p212
        %p316 = pneg %p209
        %p317 = pneg %p238
        %p318 = pneg %p235
        %s319 = sand.u32 %s225, 1
        %s320 = scalar_lea.sflag [#allocation3], %s319
        %s321 = sand.u32 %s225, 1
        %s322 = smul.addr %s321, 8
        %s323 = scalar_lea.vmem [#allocation2], %s322
        %p324 = scmp.lt.s32.totalorder %s23, 1
        %s325 = scalar_select %p324, %s23, 1
        %s326 = smul.addr %s325, 8
        %s327 = scalar_lea.vmem %s0, %s326
        %v329 = vld [vmem:[%s327] sm:$0xff]
        %v330 = vpack.c.bf16 %v329, %v329
        %v331 = vld [vmem:[%s1] sm:$0xf]
        %v332 = vld [vmem:[%s1 + $0x4] sm:$0xf]
        %v333 = vld [vmem:[%s2] sm:$0x1]
        %v335 = vperm.slane %v333, 0
        %v339 = vunpack.c.l.b16 %v331
        %v340 = vunpack.c.l.b16 %v332
        %v341 = vpack.c.b16 %v340, %v339
        %vm343 = vcmask 130048
        %v345 = vsel %vm343, %v330, 0
        %347 = vmatpush.bf16.msra.mxu0 0
        %348 = vmatpush.bf16.msra.mxu0 0
        %349 = vmatpush.bf16.msra.mxu0 0
        %350 = vmatpush.bf16.msra.mxu0 0
        %351 = vmatpush.bf16.msra.mxu0 0
        %352 = vmatpush.bf16.msra.mxu0 0
        %353 = vmatpush.bf16.msra.mxu0 0
        %354 = vmatpush.bf16.msra.mxu0 %v341
        %355 = vmatmul.bf16.gmra.mxu0 %v345
        %v356 = vpop.f32.mrf.mxu0
        %v357 = vadd.f32 %v335, %v356
        %v358 = vpop.f32.mrf.mxu0
        %359 = vdwg.mxu0
        %v360 = vmul.f32 %v357, %v357
        %vm361 = vcmask 523264
        %v362 = vsel %vm361, %v360, 0.0
        %363 = vadd.xlane.f32.xlu0 %v362
        %v364 = vpop.xlane.xlu0 %363
        %v365 = vrcp.pop 64.0
        %v366 = vmul.f32 64.0, %v365
        %v367 = vsub.f32 1.0, %v366
        %v368 = vmul.f32 %v365, %v367
        %v369 = vadd.f32 %v365, %v368
        %vm370 = vweird.f32 %v365
        %v371 = vsel %vm370, %v365, %v369
        %v372 = vmul.f32 %v364, %v371
        %v373 = vadd.f32 %v372, 1e-06
        %v374 = vrsqrt.pop %v373
        %v375 = vmul.f32 %v374, %v373
        %v376 = vmul.f32 %v375, %v374
        %v377 = vmul.f32 0.5, %v376
        %v378 = vsub.f32 1.5, %v377
        %v379 = vmul.f32 %v374, %v378
        %vm380 = vweird.f32 %v373
        %vm381 = vweird.f32 %v374
        %vm382 = vmor %vm380, %vm381
        %v383 = vsel %vm382, %v374, %v379
        %v384 = vmul.f32 %v357, %v383
        %v385 = vpack.c.bf16 %v384, %v384
        %v386 = vld [vmem:[%s3] sm:$0xf]
        %v387 = vld [vmem:[%s3 + $0x4] sm:$0xf]
        %v388 = vld [vmem:[%s3 + $0x8] sm:$0xf]
        %v389 = vld [vmem:[%s3 + $0xc] sm:$0xf]
        %v390 = vld [vmem:[%s3 + $0x10] sm:$0xf]
        %v391 = vld [vmem:[%s3 + $0x14] sm:$0xf]
        %v392 = vld [vmem:[%s3 + $0x18] sm:$0xf]
        %v393 = vld [vmem:[%s3 + $0x1c] sm:$0xf]
        %v394 = vld [vmem:[%s4] sm:$0x1]
        %v396 = vperm.slane %v394, 0
        %v406 = vunpack.c.l.b16 %v386
        %v407 = vunpack.c.l.b16 %v387
        %v408 = vunpack.c.l.b16 %v388
        %v409 = vunpack.c.l.b16 %v389
        %v410 = vunpack.c.l.b16 %v390
        %v411 = vunpack.c.l.b16 %v391
        %v412 = vunpack.c.l.b16 %v392
        %v413 = vunpack.c.l.b16 %v393
        %v414 = vpack.c.b16 %v407, %v406
        %v415 = vpack.c.b16 %v409, %v408
        %v416 = vpack.c.b16 %v411, %v410
        %v417 = vpack.c.b16 %v413, %v412
        %v423 = vsel %vm361, %v385, 0
        %425 = vmatpush.bf16.msra.mxu0 0
        %426 = vmatpush.bf16.msra.mxu0 0
        %427 = vmatpush.bf16.msra.mxu0 0
        %428 = vmatpush.bf16.msra.mxu0 0
        %429 = vmatpush.bf16.msra.mxu0 %v417
        %430 = vmatpush.bf16.msra.mxu0 %v416
        %431 = vmatpush.bf16.msra.mxu0 %v415
        %432 = vmatpush.bf16.msra.mxu0 %v414
        %433 = vmatmul.bf16.gmra.mxu0 %v423
        %v434 = vpop.f32.mrf.mxu0
        %v435 = vadd.f32 %v396, %v434
        %v436 = vpop.f32.mrf.mxu0
        %437 = vdwg.mxu0
        %v438 = vxor.u32 %v435, 2147483648
        %v439 = vmul.f32 %v438, 1.442695
        %v440 = vpow.pop %v439
        %v441 = vadd.f32 %v440, 1.0
        %v442 = vrcp.pop %v441
        %v443 = vmul.f32 %v441, %v442
        %v444 = vsub.f32 1.0, %v443
        %v445 = vmul.f32 %v442, %v444
        %v446 = vadd.f32 %v442, %v445
        %vm447 = vweird.f32 %v441
        %vm448 = vweird.f32 %v442
        %vm449 = vmor %vm447, %vm448
        %v450 = vsel %vm449, %v442, %v446
        %v451 = vand.u32 2147483647, %v441
        %vm452 = vcmp.eq.f32.partialorder %v451, 8.507059e+37
        %v453 = vand.u32 %v441, 2147483648
        %v454 = vor.u32 1.1754944e-38, %v453
        %v455 = vsel %vm452, %v454, %v450
        %v456 = vmul.f32 1.0, %v455
        %v457 = vmul.f32 %v435, %v456
        %v458 = vpack.c.bf16 %v457, %v457
        %v459 = vld [vmem:[%s5] sm:$0xf]
        %v460 = vld [vmem:[%s5 + $0x4] sm:$0xf]
        %v461 = vld [vmem:[%s5 + $0x8] sm:$0xf]
        %v462 = vld [vmem:[%s5 + $0xc] sm:$0xf]
        %v463 = vld [vmem:[%s5 + $0x10] sm:$0xf]
        %v464 = vld [vmem:[%s5 + $0x14] sm:$0xf]
        %v465 = vld [vmem:[%s5 + $0x18] sm:$0xf]
        %v466 = vld [vmem:[%s5 + $0x1c] sm:$0xf]
        %v467 = vld [vmem:[%s6] sm:$0x1]
        %v469 = vperm.slane %v467, 0
        %v479 = vunpack.c.l.b16 %v459
        %v480 = vunpack.c.l.b16 %v460
        %v481 = vunpack.c.l.b16 %v461
        %v482 = vunpack.c.l.b16 %v462
        %v483 = vunpack.c.l.b16 %v463
        %v484 = vunpack.c.l.b16 %v464
        %v485 = vunpack.c.l.b16 %v465
        %v486 = vunpack.c.l.b16 %v466
        %v487 = vpack.c.b16 %v480, %v479
        %v488 = vpack.c.b16 %v482, %v481
        %v489 = vpack.c.b16 %v484, %v483
        %v490 = vpack.c.b16 %v486, %v485
        %v496 = vsel %vm361, %v458, 0
        %498 = vmatpush.bf16.msra.mxu0 0
        %499 = vmatpush.bf16.msra.mxu0 0
        %500 = vmatpush.bf16.msra.mxu0 0
        %501 = vmatpush.bf16.msra.mxu0 0
        %502 = vmatpush.bf16.msra.mxu0 %v490
        %503 = vmatpush.bf16.msra.mxu0 %v489
        %504 = vmatpush.bf16.msra.mxu0 %v488
        %505 = vmatpush.bf16.msra.mxu0 %v487
        %506 = vmatmul.bf16.gmra.mxu0 %v496
        %v507 = vpop.f32.mrf.mxu0
        %v508 = vadd.f32 %v469, %v507
        %v509 = vpop.f32.mrf.mxu0
        %510 = vdwg.mxu0
        %v511 = vadd.f32 %v357, %v508
        %v512 = vmul.f32 %v511, %v511
        %v513 = vsel %vm361, %v512, 0.0
        %514 = vadd.xlane.f32.xlu0 %v513
        %v515 = vpop.xlane.xlu0 %514
        %v516 = vmul.f32 %v515, %v371
        %v517 = vadd.f32 %v516, 1e-06
        %v518 = vrsqrt.pop %v517
        %v519 = vmul.f32 %v518, %v517
        %v520 = vmul.f32 %v519, %v518
        %v521 = vmul.f32 0.5, %v520
        %v522 = vsub.f32 1.5, %v521
        %v523 = vmul.f32 %v518, %v522
        %vm524 = vweird.f32 %v517
        %vm525 = vweird.f32 %v518
        %vm526 = vmor %vm524, %vm525
        %v527 = vsel %vm526, %v518, %v523
        %v528 = vmul.f32 %v511, %v527
        %v529 = vpack.c.bf16 %v528, %v528
        %s530 = scalar_lea.vmem %s3, 32
        %v531 = vld [vmem:[%s530] sm:$0xf]
        %v532 = vld [vmem:[%s530 + $0x4] sm:$0xf]
        %v533 = vld [vmem:[%s530 + $0x8] sm:$0xf]
        %v534 = vld [vmem:[%s530 + $0xc] sm:$0xf]
        %v535 = vld [vmem:[%s530 + $0x10] sm:$0xf]
        %v536 = vld [vmem:[%s530 + $0x14] sm:$0xf]
        %v537 = vld [vmem:[%s530 + $0x18] sm:$0xf]
        %v538 = vld [vmem:[%s530 + $0x1c] sm:$0xf]
        %s539 = scalar_lea.vmem %s4, 1
        %v540 = vld [vmem:[%s539] sm:$0x1]
        %v542 = vperm.slane %v540, 0
        %v552 = vunpack.c.l.b16 %v531
        %v553 = vunpack.c.l.b16 %v532
        %v554 = vunpack.c.l.b16 %v533
        %v555 = vunpack.c.l.b16 %v534
        %v556 = vunpack.c.l.b16 %v535
        %v557 = vunpack.c.l.b16 %v536
        %v558 = vunpack.c.l.b16 %v537
        %v559 = vunpack.c.l.b16 %v538
        %v560 = vpack.c.b16 %v553, %v552
        %v561 = vpack.c.b16 %v555, %v554
        %v562 = vpack.c.b16 %v557, %v556
        %v563 = vpack.c.b16 %v559, %v558
        %v569 = vsel %vm361, %v529, 0
        %571 = vmatpush.bf16.msra.mxu0 0
        %572 = vmatpush.bf16.msra.mxu0 0
        %573 = vmatpush.bf16.msra.mxu0 0
        %574 = vmatpush.bf16.msra.mxu0 0
        %575 = vmatpush.bf16.msra.mxu0 %v563
        %576 = vmatpush.bf16.msra.mxu0 %v562
        %577 = vmatpush.bf16.msra.mxu0 %v561
        %578 = vmatpush.bf16.msra.mxu0 %v560
        %579 = vmatmul.bf16.gmra.mxu0 %v569
        %v580 = vpop.f32.mrf.mxu0
        %v581 = vadd.f32 %v542, %v580
        %v582 = vpop.f32.mrf.mxu0
        %583 = vdwg.mxu0
        %v584 = vxor.u32 %v581, 2147483648
        %v585 = vmul.f32 %v584, 1.442695
        %v586 = vpow.pop %v585
        %v587 = vadd.f32 %v586, 1.0
        %v588 = vrcp.pop %v587
        %v589 = vmul.f32 %v587, %v588
        %v590 = vsub.f32 1.0, %v589
        %v591 = vmul.f32 %v588, %v590
        %v592 = vadd.f32 %v588, %v591
        %vm593 = vweird.f32 %v587
        %vm594 = vweird.f32 %v588
        %vm595 = vmor %vm593, %vm594
        %v596 = vsel %vm595, %v588, %v592
        %v597 = vand.u32 2147483647, %v587
        %vm598 = vcmp.eq.f32.partialorder %v597, 8.507059e+37
        %v599 = vand.u32 %v587, 2147483648
        %v600 = vor.u32 1.1754944e-38, %v599
        %v601 = vsel %vm598, %v600, %v596
        %v602 = vmul.f32 1.0, %v601
        %v603 = vmul.f32 %v581, %v602
        %v604 = vpack.c.bf16 %v603, %v603
        %s605 = scalar_lea.vmem %s5, 32
        %v606 = vld [vmem:[%s605] sm:$0xf]
        %v607 = vld [vmem:[%s605 + $0x4] sm:$0xf]
        %v608 = vld [vmem:[%s605 + $0x8] sm:$0xf]
        %v609 = vld [vmem:[%s605 + $0xc] sm:$0xf]
        %v610 = vld [vmem:[%s605 + $0x10] sm:$0xf]
        %v611 = vld [vmem:[%s605 + $0x14] sm:$0xf]
        %v612 = vld [vmem:[%s605 + $0x18] sm:$0xf]
        %v613 = vld [vmem:[%s605 + $0x1c] sm:$0xf]
        %s614 = scalar_lea.vmem %s6, 1
        %v615 = vld [vmem:[%s614] sm:$0x1]
        %v617 = vperm.slane %v615, 0
        %v627 = vunpack.c.l.b16 %v606
        %v628 = vunpack.c.l.b16 %v607
        %v629 = vunpack.c.l.b16 %v608
        %v630 = vunpack.c.l.b16 %v609
        %v631 = vunpack.c.l.b16 %v610
        %v632 = vunpack.c.l.b16 %v611
        %v633 = vunpack.c.l.b16 %v612
        %v634 = vunpack.c.l.b16 %v613
        %v635 = vpack.c.b16 %v628, %v627
        %v636 = vpack.c.b16 %v630, %v629
        %v637 = vpack.c.b16 %v632, %v631
        %v638 = vpack.c.b16 %v634, %v633
        %v644 = vsel %vm361, %v604, 0
        %646 = vmatpush.bf16.msra.mxu0 0
        %647 = vmatpush.bf16.msra.mxu0 0
        %648 = vmatpush.bf16.msra.mxu0 0
        %649 = vmatpush.bf16.msra.mxu0 0
        %650 = vmatpush.bf16.msra.mxu0 %v638
        %651 = vmatpush.bf16.msra.mxu0 %v637
        %652 = vmatpush.bf16.msra.mxu0 %v636
        %653 = vmatpush.bf16.msra.mxu0 %v635
        %654 = vmatmul.bf16.gmra.mxu0 %v644
        %v655 = vpop.f32.mrf.mxu0
        %v656 = vadd.f32 %v617, %v655
        %v657 = vpop.f32.mrf.mxu0
        %658 = vdwg.mxu0
        %v659 = vadd.f32 %v511, %v656
        %v660 = vmul.f32 %v659, %v659
        %v661 = vsel %vm361, %v660, 0.0
        %662 = vadd.xlane.f32.xlu0 %v661
        %v663 = vpop.xlane.xlu0 %662
        %v664 = vmul.f32 %v663, %v371
        %v665 = vadd.f32 %v664, 1e-06
        %v666 = vrsqrt.pop %v665
        %v667 = vmul.f32 %v666, %v665
        %v668 = vmul.f32 %v667, %v666
        %v669 = vmul.f32 0.5, %v668
        %v670 = vsub.f32 1.5, %v669
        %v671 = vmul.f32 %v666, %v670
        %vm672 = vweird.f32 %v665
        %vm673 = vweird.f32 %v666
        %vm674 = vmor %vm672, %vm673
        %v675 = vsel %vm674, %v666, %v671
        %v676 = vmul.f32 %v659, %v675
        %v677 = vpack.c.bf16 %v676, %v676
        %s678 = scalar_lea.vmem %s3, 64
        %v679 = vld [vmem:[%s678] sm:$0xf]
        %v680 = vld [vmem:[%s678 + $0x4] sm:$0xf]
        %v681 = vld [vmem:[%s678 + $0x8] sm:$0xf]
        %v682 = vld [vmem:[%s678 + $0xc] sm:$0xf]
        %v683 = vld [vmem:[%s678 + $0x10] sm:$0xf]
        %v684 = vld [vmem:[%s678 + $0x14] sm:$0xf]
        %v685 = vld [vmem:[%s678 + $0x18] sm:$0xf]
        %v686 = vld [vmem:[%s678 + $0x1c] sm:$0xf]
        %s687 = scalar_lea.vmem %s4, 2
        %v688 = vld [vmem:[%s687] sm:$0x1]
        %v690 = vperm.slane %v688, 0
        %v700 = vunpack.c.l.b16 %v679
        %v701 = vunpack.c.l.b16 %v680
        %v702 = vunpack.c.l.b16 %v681
        %v703 = vunpack.c.l.b16 %v682
        %v704 = vunpack.c.l.b16 %v683
        %v705 = vunpack.c.l.b16 %v684
        %v706 = vunpack.c.l.b16 %v685
        %v707 = vunpack.c.l.b16 %v686
        %v708 = vpack.c.b16 %v701, %v700
        %v709 = vpack.c.b16 %v703, %v702
        %v710 = vpack.c.b16 %v705, %v704
        %v711 = vpack.c.b16 %v707, %v706
        %v717 = vsel %vm361, %v677, 0
        %719 = vmatpush.bf16.msra.mxu0 0
        %720 = vmatpush.bf16.msra.mxu0 0
        %721 = vmatpush.bf16.msra.mxu0 0
        %722 = vmatpush.bf16.msra.mxu0 0
        %723 = vmatpush.bf16.msra.mxu0 %v711
        %724 = vmatpush.bf16.msra.mxu0 %v710
        %725 = vmatpush.bf16.msra.mxu0 %v709
        %726 = vmatpush.bf16.msra.mxu0 %v708
        %727 = vmatmul.bf16.gmra.mxu0 %v717
        %v728 = vpop.f32.mrf.mxu0
        %v729 = vadd.f32 %v690, %v728
        %v730 = vpop.f32.mrf.mxu0
        %731 = vdwg.mxu0
        %v732 = vxor.u32 %v729, 2147483648
        %v733 = vmul.f32 %v732, 1.442695
        %v734 = vpow.pop %v733
        %v735 = vadd.f32 %v734, 1.0
        %v736 = vrcp.pop %v735
        %v737 = vmul.f32 %v735, %v736
        %v738 = vsub.f32 1.0, %v737
        %v739 = vmul.f32 %v736, %v738
        %v740 = vadd.f32 %v736, %v739
        %vm741 = vweird.f32 %v735
        %vm742 = vweird.f32 %v736
        %vm743 = vmor %vm741, %vm742
        %v744 = vsel %vm743, %v736, %v740
        %v745 = vand.u32 2147483647, %v735
        %vm746 = vcmp.eq.f32.partialorder %v745, 8.507059e+37
        %v747 = vand.u32 %v735, 2147483648
        %v748 = vor.u32 1.1754944e-38, %v747
        %v749 = vsel %vm746, %v748, %v744
        %v750 = vmul.f32 1.0, %v749
        %v751 = vmul.f32 %v729, %v750
        %v752 = vpack.c.bf16 %v751, %v751
        %s753 = scalar_lea.vmem %s5, 64
        %v754 = vld [vmem:[%s753] sm:$0xf]
        %v755 = vld [vmem:[%s753 + $0x4] sm:$0xf]
        %v756 = vld [vmem:[%s753 + $0x8] sm:$0xf]
        %v757 = vld [vmem:[%s753 + $0xc] sm:$0xf]
        %v758 = vld [vmem:[%s753 + $0x10] sm:$0xf]
        %v759 = vld [vmem:[%s753 + $0x14] sm:$0xf]
        %v760 = vld [vmem:[%s753 + $0x18] sm:$0xf]
        %v761 = vld [vmem:[%s753 + $0x1c] sm:$0xf]
        %s762 = scalar_lea.vmem %s6, 2
        %v763 = vld [vmem:[%s762] sm:$0x1]
        %v765 = vperm.slane %v763, 0
        %v775 = vunpack.c.l.b16 %v754
        %v776 = vunpack.c.l.b16 %v755
        %v777 = vunpack.c.l.b16 %v756
        %v778 = vunpack.c.l.b16 %v757
        %v779 = vunpack.c.l.b16 %v758
        %v780 = vunpack.c.l.b16 %v759
        %v781 = vunpack.c.l.b16 %v760
        %v782 = vunpack.c.l.b16 %v761
        %v783 = vpack.c.b16 %v776, %v775
        %v784 = vpack.c.b16 %v778, %v777
        %v785 = vpack.c.b16 %v780, %v779
        %v786 = vpack.c.b16 %v782, %v781
        %v792 = vsel %vm361, %v752, 0
        %794 = vmatpush.bf16.msra.mxu0 0
        %795 = vmatpush.bf16.msra.mxu0 0
        %796 = vmatpush.bf16.msra.mxu0 0
        %797 = vmatpush.bf16.msra.mxu0 0
        %798 = vmatpush.bf16.msra.mxu0 %v786
        %799 = vmatpush.bf16.msra.mxu0 %v785
        %800 = vmatpush.bf16.msra.mxu0 %v784
        %801 = vmatpush.bf16.msra.mxu0 %v783
        %802 = vmatmul.bf16.gmra.mxu0 %v792
        %v803 = vpop.f32.mrf.mxu0
        %v804 = vadd.f32 %v765, %v803
        %v805 = vpop.f32.mrf.mxu0
        %806 = vdwg.mxu0
        %v807 = vadd.f32 %v659, %v804
        %v808 = vmul.f32 %v807, %v807
        %v809 = vsel %vm361, %v808, 0.0
        %810 = vadd.xlane.f32.xlu0 %v809
        %v811 = vpop.xlane.xlu0 %810
        %v812 = vmul.f32 %v811, %v371
        %v813 = vadd.f32 %v812, 1e-06
        %v814 = vrsqrt.pop %v813
        %v815 = vmul.f32 %v814, %v813
        %v816 = vmul.f32 %v815, %v814
        %v817 = vmul.f32 0.5, %v816
        %v818 = vsub.f32 1.5, %v817
        %v819 = vmul.f32 %v814, %v818
        %vm820 = vweird.f32 %v813
        %vm821 = vweird.f32 %v814
        %vm822 = vmor %vm820, %vm821
        %v823 = vsel %vm822, %v814, %v819
        %v824 = vmul.f32 %v807, %v823
        %v825 = vpack.c.bf16 %v824, %v824
        %s826 = scalar_lea.vmem %s3, 96
        %v827 = vld [vmem:[%s826] sm:$0xf]
        %v828 = vld [vmem:[%s826 + $0x4] sm:$0xf]
        %v829 = vld [vmem:[%s826 + $0x8] sm:$0xf]
        %v830 = vld [vmem:[%s826 + $0xc] sm:$0xf]
        %v831 = vld [vmem:[%s826 + $0x10] sm:$0xf]
        %v832 = vld [vmem:[%s826 + $0x14] sm:$0xf]
        %v833 = vld [vmem:[%s826 + $0x18] sm:$0xf]
        %v834 = vld [vmem:[%s826 + $0x1c] sm:$0xf]
        %s835 = scalar_lea.vmem %s4, 3
        %v836 = vld [vmem:[%s835] sm:$0x1]
        %v838 = vperm.slane %v836, 0
        %v848 = vunpack.c.l.b16 %v827
        %v849 = vunpack.c.l.b16 %v828
        %v850 = vunpack.c.l.b16 %v829
        %v851 = vunpack.c.l.b16 %v830
        %v852 = vunpack.c.l.b16 %v831
        %v853 = vunpack.c.l.b16 %v832
        %v854 = vunpack.c.l.b16 %v833
        %v855 = vunpack.c.l.b16 %v834
        %v856 = vpack.c.b16 %v849, %v848
        %v857 = vpack.c.b16 %v851, %v850
        %v858 = vpack.c.b16 %v853, %v852
        %v859 = vpack.c.b16 %v855, %v854
        %v865 = vsel %vm361, %v825, 0
        %867 = vmatpush.bf16.msra.mxu0 0
        %868 = vmatpush.bf16.msra.mxu0 0
        %869 = vmatpush.bf16.msra.mxu0 0
        %870 = vmatpush.bf16.msra.mxu0 0
        %871 = vmatpush.bf16.msra.mxu0 %v859
        %872 = vmatpush.bf16.msra.mxu0 %v858
        %873 = vmatpush.bf16.msra.mxu0 %v857
        %874 = vmatpush.bf16.msra.mxu0 %v856
        %875 = vmatmul.bf16.gmra.mxu0 %v865
        %v876 = vpop.f32.mrf.mxu0
        %v877 = vadd.f32 %v838, %v876
        %v878 = vpop.f32.mrf.mxu0
        %879 = vdwg.mxu0
        %v880 = vxor.u32 %v877, 2147483648
        %v881 = vmul.f32 %v880, 1.442695
        %v882 = vpow.pop %v881
        %v883 = vadd.f32 %v882, 1.0
        %v884 = vrcp.pop %v883
        %v885 = vmul.f32 %v883, %v884
        %v886 = vsub.f32 1.0, %v885
        %v887 = vmul.f32 %v884, %v886
        %v888 = vadd.f32 %v884, %v887
        %vm889 = vweird.f32 %v883
        %vm890 = vweird.f32 %v884
        %vm891 = vmor %vm889, %vm890
        %v892 = vsel %vm891, %v884, %v888
        %v893 = vand.u32 2147483647, %v883
        %vm894 = vcmp.eq.f32.partialorder %v893, 8.507059e+37
        %v895 = vand.u32 %v883, 2147483648
        %v896 = vor.u32 1.1754944e-38, %v895
        %v897 = vsel %vm894, %v896, %v892
        %v898 = vmul.f32 1.0, %v897
        %v899 = vmul.f32 %v877, %v898
        %v900 = vpack.c.bf16 %v899, %v899
        %s901 = scalar_lea.vmem %s5, 96
        %v902 = vld [vmem:[%s901] sm:$0xf]
        %v903 = vld [vmem:[%s901 + $0x4] sm:$0xf]
        %v904 = vld [vmem:[%s901 + $0x8] sm:$0xf]
        %v905 = vld [vmem:[%s901 + $0xc] sm:$0xf]
        %v906 = vld [vmem:[%s901 + $0x10] sm:$0xf]
        %v907 = vld [vmem:[%s901 + $0x14] sm:$0xf]
        %v908 = vld [vmem:[%s901 + $0x18] sm:$0xf]
        %v909 = vld [vmem:[%s901 + $0x1c] sm:$0xf]
        %s910 = scalar_lea.vmem %s6, 3
        %v911 = vld [vmem:[%s910] sm:$0x1]
        %v913 = vperm.slane %v911, 0
        %v923 = vunpack.c.l.b16 %v902
        %v924 = vunpack.c.l.b16 %v903
        %v925 = vunpack.c.l.b16 %v904
        %v926 = vunpack.c.l.b16 %v905
        %v927 = vunpack.c.l.b16 %v906
        %v928 = vunpack.c.l.b16 %v907
        %v929 = vunpack.c.l.b16 %v908
        %v930 = vunpack.c.l.b16 %v909
        %v931 = vpack.c.b16 %v924, %v923
        %v932 = vpack.c.b16 %v926, %v925
        %v933 = vpack.c.b16 %v928, %v927
        %v934 = vpack.c.b16 %v930, %v929
        %v940 = vsel %vm361, %v900, 0
        %942 = vmatpush.bf16.msra.mxu0 0
        %943 = vmatpush.bf16.msra.mxu0 0
        %944 = vmatpush.bf16.msra.mxu0 0
        %945 = vmatpush.bf16.msra.mxu0 0
        %946 = vmatpush.bf16.msra.mxu0 %v934
        %947 = vmatpush.bf16.msra.mxu0 %v933
        %948 = vmatpush.bf16.msra.mxu0 %v932
        %949 = vmatpush.bf16.msra.mxu0 %v931
        %950 = vmatmul.bf16.gmra.mxu0 %v940
        %v951 = vpop.f32.mrf.mxu0
        %v952 = vadd.f32 %v913, %v951
        %v953 = vpop.f32.mrf.mxu0
        %954 = vdwg.mxu0
        %v955 = vadd.f32 %v807, %v952
        %v956 = vpack.c.bf16 %v955, %v955
        %v957 = vld [vmem:[%s7] sm:$0xf]
        %v958 = vld [vmem:[%s7 + $0x4] sm:$0xf]
        %v959 = vld [vmem:[%s7 + $0x8] sm:$0xf]
        %v960 = vld [vmem:[%s7 + $0xc] sm:$0xf]
        %v961 = vld [vmem:[%s7 + $0x10] sm:$0xf]
        %v962 = vld [vmem:[%s7 + $0x14] sm:$0xf]
        %v963 = vld [vmem:[%s7 + $0x18] sm:$0xf]
        %v964 = vld [vmem:[%s7 + $0x1c] sm:$0xf]
        %v965 = vld [vmem:[%s8] sm:$0x1]
        %v967 = vperm.slane %v965, 0
        %v977 = vunpack.c.l.b16 %v957
        %v978 = vunpack.c.l.b16 %v958
        %v979 = vunpack.c.l.b16 %v959
        %v980 = vunpack.c.l.b16 %v960
        %v981 = vunpack.c.l.b16 %v961
        %v982 = vunpack.c.l.b16 %v962
        %v983 = vunpack.c.l.b16 %v963
        %v984 = vunpack.c.l.b16 %v964
        %v985 = vpack.c.b16 %v978, %v977
        %v986 = vpack.c.b16 %v980, %v979
        %v987 = vpack.c.b16 %v982, %v981
        %v988 = vpack.c.b16 %v984, %v983
        %v994 = vsel %vm361, %v956, 0
        %996 = vmatpush.bf16.msra.mxu0 0
        %997 = vmatpush.bf16.msra.mxu0 0
        %998 = vmatpush.bf16.msra.mxu0 0
        %999 = vmatpush.bf16.msra.mxu0 0
        %1000 = vmatpush.bf16.msra.mxu0 %v988
        %1001 = vmatpush.bf16.msra.mxu0 %v987
        %1002 = vmatpush.bf16.msra.mxu0 %v986
        %1003 = vmatpush.bf16.msra.mxu0 %v985
        %1004 = vmatmul.bf16.gmra.mxu0 %v994
        %v1005 = vpop.f32.mrf.mxu0
        %v1006 = vadd.f32 %v967, %v1005
        %v1007 = vpop.f32.mrf.mxu0
        %1008 = vdwg.mxu0
        %vm1009 = vcmask 261120
        %1010 = vst.msk [vmem:[%s323] sm:$0xff] %vm1009, %v1006
        %s1011 = sand.u32 %s225, 1
        %s1012 = scalar_lea.sflag [#allocation3], %s1011
        %s1013 = sand.u32 %s225, 1
        %s1014 = smul.addr %s1013, 8
        %s1015 = scalar_lea.vmem [#allocation2], %s1014
        // Predicated region
        $region57: #{approximator_forward.1} parent=55 // pred_check
          %p1016 = pneg %p235
        $region58: #{approximator_forward.1} parent=55 // pred_check_branch
          %1018 = sbr.rel (%p1016) target = $region60
        $region59: #{approximator_forward.1} parent=55 // pred_region
          %1020 = vsyncadd %s1012, 0
          %s1021 = smul.addr %s23, 8
          %s1022 = scalar_lea.hbm %s9, %s1021
          %s1024 = sshll.u32 %s1015, 4
          %s1025 = int_to_ptr.vmem [resolvable:$true] %s1024
          %s1026 = sshll.u32 %s1022, 4
          %s1027 = int_to_ptr.hbm [resolvable:$true] %s1026
          %1029 = dma.vmem_to_hbm [thread:$0]  %s1025, 128, %s1027, %s1012
        $region60: #{approximator_forward.1} parent=55 // pred_fallthru
          _
      $region56: #{approximator_forward.1} parent=5 // pred_fallthru
        _
      %p1030 = scmp.le.s32.totalorder 2, %s18
      // Predicated region
      $region61: #{approximator_forward.1} parent=5 // pred_check
        %p1031 = pneg %p1030
      $region62: #{approximator_forward.1} parent=5 // pred_check_branch
        %1033 = sbr.rel (%p1031) target = $region64
      $region63: #{approximator_forward.1} parent=5 // pred_region
        %s1034 = ssub.s32 %s18, 2
        // Predicated region
        $region65: #{approximator_forward.1} parent=63 // pred_check
          %p1035 = pneg %p241
        $region66: #{approximator_forward.1} parent=63 // pred_check_branch
          %1037 = sbr.rel (%p1035) target = $region68
        $region67: #{approximator_forward.1} parent=63 // pred_region
          %s1038 = sand.u32 %s226, 1
          %s1039 = scalar_lea.sflag [#allocation3], %s1038
          %s1040 = sand.u32 %s226, 1
          %s1041 = smul.addr %s1040, 8
          %s1042 = scalar_lea.vmem [#allocation2], %s1041
          %1044 = dma.done %s1039, 128
        $region68: #{approximator_forward.1} parent=63 // pred_fallthru
          _
      $region64: #{approximator_forward.1} parent=5 // pred_fallthru
        _
    $region6: #{approximator_forward.1} parent=1 // loop_footer
      %s22 = sadd.s32 1, %s18
    $region7: #{approximator_forward.1} parent=1 // loop_footer_branch
      %17 = sbr.rel target = $region3
    $region8: #{approximator_forward.1} parent=1 // loop_exit
      _
    %1045 = vsyncpa [#allocation3], 1
    %s1046 = scalar_lea.sflag [#allocation3], 1
    %1047 = vsyncpa %s1046, 1

</llo_original>
